<compile_context>
chip_gen: v6e
topology: v6e:2x2x1
jax: 0.10.0
libtpu: 0.0.40
codegen_flags: <defaults>
</compile_context>

<pallas_src>
import jax
import jax.numpy as jnp
from jax.experimental import pallas as pl
from jax.experimental.pallas import tpu as pltpu

EMBED_DIM = 32        # embedding_dim (small for the synthetic example)
NUM_HEADS = 8         # num_heads
OUTPUT_LENGTH = 16    # output_length


def _classifier_kernel(pid_ref, text_ref, w_all_ref, bias_ref, maskcol_ref,
                       out_ref, mask_ref):
    # pid_ref    : (1, TB)    int32  problem id per sample (batch on lane axis)
    # text_ref   : (TB, D)    bf16   text embeddings, natural layout
    # w_all_ref  : (P*L, D)   bf16   head weights per (problem, slot)   (resident)
    # bias_ref   : (P*L, 1)   f32    crit·w_h + b_h per (problem, slot) (resident)
    # maskcol_ref: (P*L, 1)   f32    valid-slot mask per (problem, slot)(resident)
    # out_ref / mask_ref : (L, TB) f32
    pl_rows = w_all_ref.shape[0]
    n_slots, tb = out_ref.shape
    n_problems = pl_rows // n_slots

    # One MXU matmul for ALL (problem, slot) rows; contraction over D with the
    # text block kept in its natural (TB, D) layout (no wrapper transpose).
    all_logits = jax.lax.dot_general(
        w_all_ref[...], text_ref[...],
        dimension_numbers=(((1,), (1,)), ((), ())),
        preferred_element_type=jnp.float32)                     # (P*L, TB)
    all_logits = all_logits + bias_ref[...]                     # + (P*L, 1)

    pid = pid_ref[...]                                          # (1, TB)
    maskcol = maskcol_ref[...]                                  # (P*L, 1)

    # Small P-way select of each sample's problem plane (pure VPU cmp+sel).
    logits = jnp.zeros((n_slots, tb), jnp.float32)
    mask = jnp.zeros((n_slots, tb), jnp.float32)
    for p in range(n_problems):                                 # tiny static P
        sel = pid == p                                          # (1, TB)
        lo, hi = p * n_slots, (p + 1) * n_slots
        logits = jnp.where(sel, all_logits[lo:hi, :], logits)
        mask = jnp.where(sel, maskcol[lo:hi, :], mask)

    out_ref[...] = (jax.nn.sigmoid(logits) * mask).astype(out_ref.dtype)
    mask_ref[...] = mask.astype(mask_ref.dtype)


def build_problem_tables(criteria, mapping, head_w, head_b, output_length):
    """Static per-problem tables (computed once; independent of the batch).

    Returns:
      w_all    (P*L, D) bf16 : head weight of slot (p, l) (zero-padded slots
                               reuse head 0; masked out downstream)
      bias_col (P*L, 1) f32  : crit[p,l]·w_h + b_h
      mask_col (P*L, 1) f32  : 1.0 on valid slots, 0.0 on padded slots
    """
    w_rows, bias_rows, mask_rows = [], [], []
    for pid in range(len(mapping)):
        heads = jnp.asarray(mapping[pid], dtype=jnp.int32)        # (n,)
        n = int(heads.shape[0])
        pad = output_length - n
        w = head_w[heads]                                         # (n, D)
        b = head_b[heads]                                         # (n,)
        cb = jnp.sum(criteria[pid] * w, axis=-1) + b              # (n,)
        w_rows.append(jnp.pad(w, ((0, pad), (0, 0))))
        bias_rows.append(jnp.pad(cb, (0, pad)))
        mask_rows.append(jnp.pad(jnp.ones((n,), jnp.float32), (0, pad)))
    w_all = jnp.concatenate(w_rows, axis=0).astype(jnp.bfloat16)  # (P*L, D)
    bias_col = jnp.concatenate(bias_rows).reshape(-1, 1)          # (P*L, 1)
    mask_col = jnp.concatenate(mask_rows).reshape(-1, 1)          # (P*L, 1)
    return w_all, bias_col, mask_col


def _round_up(x, m):
    return ((x + m - 1) // m) * m


def multi_domain_classifier(text_emb, problem_indices, w_all, bias_col,
                            mask_col, output_length=OUTPUT_LENGTH,
                            block_b=None):
    """Returns (padded_outputs [B, L], mask [B, L]) like the PyTorch module."""
    B, D = text_emb.shape
    PL = w_all.shape[0]
    L = output_length

    if block_b is None:
        # 128-aligned lane-dense blocks (unmasked stores); for large batches
        # aim for >= 2 blocks so the 'parallel' axis can shard across v7x's
        # two TensorCores.  Footprint at 1024 lanes is <1 MiB, far under VMEM.
        block_b = min(1024, _round_up(pl.cdiv(B, 2), 128))
    else:
        block_b = _round_up(block_b, 128)
    n_blk = pl.cdiv(B, block_b)
    b_pad = n_blk * block_b - B

    text_p = jnp.pad(text_emb, ((0, b_pad), (0, 0))).astype(jnp.bfloat16)
    pid_row = jnp.pad(problem_indices.astype(jnp.int32),
                      (0, b_pad)).reshape(1, -1)                  # (1, Bp)

    out_t, mask_t = pl.pallas_call(
        _classifier_kernel,
        out_shape=(
            jax.ShapeDtypeStruct((L, n_blk * block_b), jnp.float32),
            jax.ShapeDtypeStruct((L, n_blk * block_b), jnp.float32),
        ),
        grid_spec=pltpu.PrefetchScalarGridSpec(
            num_scalar_prefetch=0,
            grid=(n_blk,),
            in_specs=[
                pl.BlockSpec((1, block_b), lambda i: (0, i)),     # problem ids
                pl.BlockSpec((block_b, D), lambda i: (i, 0)),     # text (bf16)
                pl.BlockSpec((PL, D), lambda i: (0, 0)),          # W_all (res.)
                pl.BlockSpec((PL, 1), lambda i: (0, 0)),          # crit·w+b
                pl.BlockSpec((PL, 1), lambda i: (0, 0)),          # slot mask
            ],
            out_specs=[
                pl.BlockSpec((L, block_b), lambda i: (0, i)),     # outputs^T
                pl.BlockSpec((L, block_b), lambda i: (0, i)),     # mask^T
            ],
        ),
        compiler_params=pltpu.CompilerParams(
            dimension_semantics=("parallel",)),
    )(pid_row, text_p, w_all, bias_col, mask_col)

    return out_t.T[:B], mask_t.T[:B]


if __name__ == "__main__":
    key = jax.random.PRNGKey(0)
    k_w, k_b, k_emb, k_crit = jax.random.split(key, 4)

    # Classification heads: NUM_HEADS independent Linear(D, 1) layers, stacked.
    head_w = jax.random.normal(k_w, (NUM_HEADS, EMBED_DIM), jnp.float32) * 0.1
    head_b = jax.random.normal(k_b, (NUM_HEADS,), jnp.float32) * 0.1

    # Static criteria -> head mapping (per problem), like the PyTorch ctor arg.
    criteria_to_head_mapping = [[0, 2, 5], [1, 3, 4, 6, 7], [0, 1]]

    # Criteria embeddings: problem_id -> [n_criteria, D]
    criteria = {
        pid: jax.random.normal(jax.random.fold_in(k_crit, pid),
                               (len(heads), EMBED_DIM), jnp.float32)
        for pid, heads in enumerate(criteria_to_head_mapping)
    }

    B = 2
    text_emb = jax.random.normal(k_emb, (B, EMBED_DIM), jnp.float32)
    problem_indices = jnp.array([1, 0], dtype=jnp.int32)

    # Static per-(problem, slot) tables (replace all per-sample side streams).
    w_all, bias_col, mask_col = build_problem_tables(
        criteria, criteria_to_head_mapping, head_w, head_b, OUTPUT_LENGTH)

    padded_outputs, out_mask = multi_domain_classifier(
        text_emb, problem_indices, w_all, bias_col, mask_col)
    jax.block_until_ready((padded_outputs, out_mask))

    # Pure-JAX reference: the original per-sample / per-criterion formulation.
    ref = jnp.zeros((B, OUTPUT_LENGTH), jnp.float32)
    ref_mask = jnp.zeros((B, OUTPUT_LENGTH), jnp.float32)
    for i in range(B):
        pidx = int(problem_indices[i])
        heads = criteria_to_head_mapping[pidx]
        for j, h in enumerate(heads):
            combined = text_emb[i] + criteria[pidx][j]
            logit = jnp.dot(combined, head_w[h]) + head_b[h]
            ref = ref.at[i, j].set(jax.nn.sigmoid(logit))
            ref_mask = ref_mask.at[i, j].set(1.0)

    assert padded_outputs.shape == (B, OUTPUT_LENGTH)
    assert out_mask.shape == (B, OUTPUT_LENGTH)
    assert jnp.allclose(out_mask, ref_mask)
    # bf16 is only used for the text·head_w MXU matmul (f32 accumulation);
    # the crit·w + b part stays in f32.
    assert jnp.allclose(padded_outputs, ref, atol=5e-3), (
        float(jnp.max(jnp.abs(padded_outputs - ref))))
    print("KERNEL_OK")
</pallas_src>

<mosaic_0001>
module attributes {stable_mosaic.version = 11 : i64} {
  func.func @_classifier_kernel(%arg0: i32, %arg1: memref<1x128xi32, #tpu.memory_space<vmem>>, %arg2: memref<128x32xbf16, #tpu.memory_space<vmem>>, %arg3: memref<48x32xbf16, #tpu.memory_space<vmem>>, %arg4: memref<48x1xf32, #tpu.memory_space<vmem>>, %arg5: memref<48x1xf32, #tpu.memory_space<vmem>>, %arg6: memref<16x128xf32, #tpu.memory_space<vmem>>, %arg7: memref<16x128xf32, #tpu.memory_space<vmem>>) attributes {dimension_semantics = [#tpu.dimension_semantics<parallel>], iteration_bounds = array<i64: 1>, scalar_prefetch = 0 : i64, scratch_operands = 0 : i64, tpu.core_type = #tpu.core_type<tc>, window_params = [{transform_indices = @transform_0, window_bounds = array<i64: 1, 128>}, {transform_indices = @transform_1, window_bounds = array<i64: 128, 32>}, {pipeline_mode = #tpu.pipeline_mode<synchronous>, transform_indices = @transform_2, window_bounds = array<i64: 48, 32>}, {pipeline_mode = #tpu.pipeline_mode<synchronous>, transform_indices = @transform_3, window_bounds = array<i64: 48, 1>}, {pipeline_mode = #tpu.pipeline_mode<synchronous>, transform_indices = @transform_4, window_bounds = array<i64: 48, 1>}, {transform_indices = @transform_5, window_bounds = array<i64: 16, 128>}, {transform_indices = @transform_6, window_bounds = array<i64: 16, 128>}]} {
    %c0 = arith.constant 0 : index
    %c0_0 = arith.constant 0 : index
    %0 = vector.load %arg3[%c0, %c0_0] : memref<48x32xbf16, #tpu.memory_space<vmem>>, vector<48x32xbf16>
    %c0_1 = arith.constant 0 : index
    %c0_2 = arith.constant 0 : index
    %1 = vector.load %arg2[%c0_1, %c0_2] : memref<128x32xbf16, #tpu.memory_space<vmem>>, vector<128x32xbf16>
    %cst = arith.constant dense<0.000000e+00> : vector<48x128xf32>
    %2 = tpu.matmul %0, %1, %cst {dimension_numbers = #tpu.dot_dimension_numbers<[1], [1], [0], [0], [0, 0, 1, 0], [], []>} : vector<48x32xbf16>, vector<128x32xbf16>, vector<48x128xf32> -> vector<48x128xf32>
    %c0_3 = arith.constant 0 : index
    %c0_4 = arith.constant 0 : index
    %3 = vector.load %arg4[%c0_3, %c0_4] : memref<48x1xf32, #tpu.memory_space<vmem>>, vector<48x1xf32>
    %4 = vector.broadcast %3 : vector<48x1xf32> to vector<48x128xf32>
    %5 = arith.addf %2, %4 : vector<48x128xf32>
    %c0_5 = arith.constant 0 : index
    %c0_6 = arith.constant 0 : index
    %6 = vector.load %arg1[%c0_5, %c0_6] : memref<1x128xi32, #tpu.memory_space<vmem>>, vector<1x128xi32>
    %c0_7 = arith.constant 0 : index
    %c0_8 = arith.constant 0 : index
    %7 = vector.load %arg5[%c0_7, %c0_8] : memref<48x1xf32, #tpu.memory_space<vmem>>, vector<48x1xf32>
    %cst_9 = arith.constant 0.000000e+00 : f32
    %8 = vector.broadcast %cst_9 : f32 to vector<16x128xf32>
    %cst_10 = arith.constant 0.000000e+00 : f32
    %9 = vector.broadcast %cst_10 : f32 to vector<16x128xf32>
    %c0_i32 = arith.constant 0 : i32
    %10 = vector.broadcast %c0_i32 : i32 to vector<1x128xi32>
    %11 = arith.cmpi eq, %6, %10 : vector<1x128xi32>
    %12 = vector.extract_strided_slice %5 {offsets = [0, 0], sizes = [16, 128], strides = [1, 1]} : vector<48x128xf32> to vector<16x128xf32>
    %13 = vector.shape_cast %11 : vector<1x128xi1> to vector<1x128xi1>
    %14 = vector.broadcast %13 : vector<1x128xi1> to vector<16x128xi1>
    %15 = arith.select %14, %12, %8 : vector<16x128xi1>, vector<16x128xf32>
    %16 = vector.extract_strided_slice %7 {offsets = [0, 0], sizes = [16, 1], strides = [1, 1]} : vector<48x1xf32> to vector<16x1xf32>
    %17 = vector.shape_cast %11 : vector<1x128xi1> to vector<1x128xi1>
    %18 = vector.broadcast %17 : vector<1x128xi1> to vector<16x128xi1>
    %19 = vector.shape_cast %16 : vector<16x1xf32> to vector<16x1xf32>
    %20 = vector.broadcast %19 : vector<16x1xf32> to vector<16x128xf32>
    %21 = arith.select %18, %20, %9 : vector<16x128xi1>, vector<16x128xf32>
    %c1_i32 = arith.constant 1 : i32
    %22 = vector.broadcast %c1_i32 : i32 to vector<1x128xi32>
    %23 = arith.cmpi eq, %6, %22 : vector<1x128xi32>
    %24 = vector.extract_strided_slice %5 {offsets = [16, 0], sizes = [16, 128], strides = [1, 1]} : vector<48x128xf32> to vector<16x128xf32>
    %25 = vector.shape_cast %23 : vector<1x128xi1> to vector<1x128xi1>
    %26 = vector.broadcast %25 : vector<1x128xi1> to vector<16x128xi1>
    %27 = arith.select %26, %24, %15 : vector<16x128xi1>, vector<16x128xf32>
    %28 = vector.extract_strided_slice %7 {offsets = [16, 0], sizes = [16, 1], strides = [1, 1]} : vector<48x1xf32> to vector<16x1xf32>
    %29 = vector.shape_cast %23 : vector<1x128xi1> to vector<1x128xi1>
    %30 = vector.broadcast %29 : vector<1x128xi1> to vector<16x128xi1>
    %31 = vector.shape_cast %28 : vector<16x1xf32> to vector<16x1xf32>
    %32 = vector.broadcast %31 : vector<16x1xf32> to vector<16x128xf32>
    %33 = arith.select %30, %32, %21 : vector<16x128xi1>, vector<16x128xf32>
    %c2_i32 = arith.constant 2 : i32
    %34 = vector.broadcast %c2_i32 : i32 to vector<1x128xi32>
    %35 = arith.cmpi eq, %6, %34 : vector<1x128xi32>
    %36 = vector.extract_strided_slice %5 {offsets = [32, 0], sizes = [16, 128], strides = [1, 1]} : vector<48x128xf32> to vector<16x128xf32>
    %37 = vector.shape_cast %35 : vector<1x128xi1> to vector<1x128xi1>
    %38 = vector.broadcast %37 : vector<1x128xi1> to vector<16x128xi1>
    %39 = arith.select %38, %36, %27 : vector<16x128xi1>, vector<16x128xf32>
    %40 = vector.extract_strided_slice %7 {offsets = [32, 0], sizes = [16, 1], strides = [1, 1]} : vector<48x1xf32> to vector<16x1xf32>
    %41 = vector.shape_cast %35 : vector<1x128xi1> to vector<1x128xi1>
    %42 = vector.broadcast %41 : vector<1x128xi1> to vector<16x128xi1>
    %43 = vector.shape_cast %40 : vector<16x1xf32> to vector<16x1xf32>
    %44 = vector.broadcast %43 : vector<16x1xf32> to vector<16x128xf32>
    %45 = arith.select %42, %44, %33 : vector<16x128xi1>, vector<16x128xf32>
    %46 = arith.negf %39 : vector<16x128xf32>
    %47 = math.exp %46 : vector<16x128xf32>
    %cst_11 = arith.constant 1.000000e+00 : f32
    %48 = vector.broadcast %cst_11 : f32 to vector<16x128xf32>
    %49 = arith.addf %48, %47 : vector<16x128xf32>
    %50 = arith.divf %48, %49 : vector<16x128xf32>
    %51 = arith.mulf %50, %45 : vector<16x128xf32>
    %c0_12 = arith.constant 0 : index
    %c0_13 = arith.constant 0 : index
    %52 = vector.load %arg6[%c0_12, %c0_13] : memref<16x128xf32, #tpu.memory_space<vmem>>, vector<16x128xf32>
    tpu.vector_store %arg6[%c0_12, %c0_13], %51 {strides = array<i32>} : memref<16x128xf32, #tpu.memory_space<vmem>>, vector<16x128xf32>,
    %c0_14 = arith.constant 0 : index
    %c0_15 = arith.constant 0 : index
    %53 = vector.load %arg7[%c0_14, %c0_15] : memref<16x128xf32, #tpu.memory_space<vmem>>, vector<16x128xf32>
    tpu.vector_store %arg7[%c0_14, %c0_15], %45 {strides = array<i32>} : memref<16x128xf32, #tpu.memory_space<vmem>>, vector<16x128xf32>,
    return
  }
  func.func @transform_0(%arg0: i32) -> (i32, i32) {
    %c0_i32 = arith.constant 0 : i32
    %c0_i32_0 = arith.constant 0 : i32
    return %c0_i32, %arg0 : i32, i32
  }
  func.func @transform_1(%arg0: i32) -> (i32, i32) {
    %c0_i32 = arith.constant 0 : i32
    %c0_i32_0 = arith.constant 0 : i32
    return %arg0, %c0_i32 : i32, i32
  }
  func.func @transform_2(%arg0: i32) -> (i32, i32) {
    %c0_i32 = arith.constant 0 : i32
    %c0_i32_0 = arith.constant 0 : i32
    %c0_i32_1 = arith.constant 0 : i32
    return %c0_i32, %c0_i32_0 : i32, i32
  }
  func.func @transform_3(%arg0: i32) -> (i32, i32) {
    %c0_i32 = arith.constant 0 : i32
    %c0_i32_0 = arith.constant 0 : i32
    %c0_i32_1 = arith.constant 0 : i32
    return %c0_i32, %c0_i32_0 : i32, i32
  }
  func.func @transform_4(%arg0: i32) -> (i32, i32) {
    %c0_i32 = arith.constant 0 : i32
    %c0_i32_0 = arith.constant 0 : i32
    %c0_i32_1 = arith.constant 0 : i32
    return %c0_i32, %c0_i32_0 : i32, i32
  }
  func.func @transform_5(%arg0: i32) -> (i32, i32) {
    %c0_i32 = arith.constant 0 : i32
    %c0_i32_0 = arith.constant 0 : i32
    return %c0_i32, %arg0 : i32, i32
  }
  func.func @transform_6(%arg0: i32) -> (i32, i32) {
    %c0_i32 = arith.constant 0 : i32
    %c0_i32_0 = arith.constant 0 : i32
    return %c0_i32, %arg0 : i32, i32
  }
}

</mosaic_0001>

<llo_original>
// kernel: tpu_custom_call.1
$region0: #{tpu_custom_call.1}
  #allocation0 [shape = 'u32[]', space=smem, size = 0x4, offset = 0x4, fixed_abs, tag = 'smem constant byte address 0x4 - core index']
  #allocation1 [shape = 'u32[144,128]{1,0:T(1,128)}', space=vmem, size = 0x12000, scoped, tag = 'internal scratch']
  %s0 = inlined_call_operand.vmem [shape: s32[1,128], index: 0, kind: input, shape index: {}]
  %s1 = inlined_call_operand.vmem [shape: bf16[128,32], index: 1, kind: input, shape index: {}]
  %s2 = inlined_call_operand.vmem [shape: bf16[48,32], index: 2, kind: input, shape index: {}]
  %s3 = inlined_call_operand.vmem [shape: f32[48,1], index: 3, kind: input, shape index: {}]
  %s4 = inlined_call_operand.vmem [shape: f32[48,1], index: 4, kind: input, shape index: {}]
  %s5 = inlined_call_operand.hbm [shape: f32[16,128], index: 5, kind: output, shape index: {0}]
  %s6 = inlined_call_operand.hbm [shape: f32[16,128], index: 6, kind: output, shape index: {1}]
  %7 = xla_tuple %s5, %s6
  %s8 = sld [smem:[#allocation0]]
  $region38: #{tpu_custom_call.1} parent=0
    _
  %s10 = ssub.s32 1, %s8
  %s11 = scalar_select 0, %s10, %s8
  $region1: #{tpu_custom_call.1} parent=0
    #allocation2 [shape = 'u8[8192]{0}', space=vmem, size = 0x2000, scoped, tag = 'output window, operand 0, single buffered']
    #allocation3 [shape = 's32[1]{0}', space=sflag, size = 0x4, scoped, tag = 'scoped memory for tpu_custom_call.1']
    #allocation4 [shape = 'u8[8192]{0}', space=vmem, size = 0x2000, scoped, tag = 'output window, operand 1, single buffered']
    #allocation5 [shape = 's32[1]{0}', space=sflag, size = 0x4, scoped, tag = 'scoped memory for tpu_custom_call.1']
    %12 = vsyncpa [#allocation3], 0
    %13 = vsyncpa [#allocation5], 0
    // Predicated region
    $region2: #{tpu_custom_call.1} parent=1 // pred_check
      _
    $region3: #{tpu_custom_call.1} parent=1 // pred_check_branch
      %15 = sbr.rel (0) target = $region5
    $region4: #{tpu_custom_call.1} parent=1 // pred_region
      _
    $region5: #{tpu_custom_call.1} parent=1 // pred_fallthru
      _
    // Predicated region
    $region6: #{tpu_custom_call.1} parent=1 // pred_check
      _
    $region7: #{tpu_custom_call.1} parent=1 // pred_check_branch
      %17 = sbr.rel (0) target = $region9
    $region8: #{tpu_custom_call.1} parent=1 // pred_region
      _
    $region9: #{tpu_custom_call.1} parent=1 // pred_fallthru
      _
    // Predicated region
    $region10: #{tpu_custom_call.1} parent=1 // pred_check
      _
    $region11: #{tpu_custom_call.1} parent=1 // pred_check_branch
      %19 = sbr.rel (0) target = $region13
    $region12: #{tpu_custom_call.1} parent=1 // pred_region
      _
    $region13: #{tpu_custom_call.1} parent=1 // pred_fallthru
      _
    // Predicated region
    $region14: #{tpu_custom_call.1} parent=1 // pred_check
      _
    $region15: #{tpu_custom_call.1} parent=1 // pred_check_branch
      %21 = sbr.rel (0) target = $region17
    $region16: #{tpu_custom_call.1} parent=1 // pred_region
      _
    $region17: #{tpu_custom_call.1} parent=1 // pred_fallthru
      _
    // Predicated region
    $region18: #{tpu_custom_call.1} parent=1 // pred_check
      _
    $region19: #{tpu_custom_call.1} parent=1 // pred_check_branch
      %23 = sbr.rel (0) target = $region21
    $region20: #{tpu_custom_call.1} parent=1 // pred_region
      _
    $region21: #{tpu_custom_call.1} parent=1 // pred_fallthru
      _
    %v25 = vld [vmem:[%s2] sm:$0xf]
    %v26 = vld [vmem:[%s2 + $0x4] sm:$0xf]
    %v27 = vld [vmem:[%s2 + $0x8] sm:$0xf]
    %v28 = vld [vmem:[%s2 + $0xc] sm:$0xf]
    %v29 = vld [vmem:[%s2 + $0x10] sm:$0xf]
    %v30 = vld [vmem:[%s2 + $0x14] sm:$0xf]
    %v31 = vld [vmem:[%s1] sm:$0xf]
    %v32 = vld [vmem:[%s1 + $0x4] sm:$0xf]
    %v33 = vld [vmem:[%s1 + $0x8] sm:$0xf]
    %v34 = vld [vmem:[%s1 + $0xc] sm:$0xf]
    %v35 = vld [vmem:[%s1 + $0x10] sm:$0xf]
    %v36 = vld [vmem:[%s1 + $0x14] sm:$0xf]
    %v37 = vld [vmem:[%s1 + $0x18] sm:$0xf]
    %v38 = vld [vmem:[%s1 + $0x1c] sm:$0xf]
    %v39 = vld [vmem:[%s1 + $0x20] sm:$0xf]
    %v40 = vld [vmem:[%s1 + $0x24] sm:$0xf]
    %v41 = vld [vmem:[%s1 + $0x28] sm:$0xf]
    %v42 = vld [vmem:[%s1 + $0x2c] sm:$0xf]
    %v43 = vld [vmem:[%s1 + $0x30] sm:$0xf]
    %v44 = vld [vmem:[%s1 + $0x34] sm:$0xf]
    %v45 = vld [vmem:[%s1 + $0x38] sm:$0xf]
    %v46 = vld [vmem:[%s1 + $0x3c] sm:$0xf]
    %v47 = vld [vmem:[%s3] sm:$0xff]
    %v48 = vld [vmem:[%s3 + $0x8] sm:$0xff]
    %v49 = vld [vmem:[%s3 + $0x10] sm:$0xff]
    %v50 = vld [vmem:[%s3 + $0x18] sm:$0xff]
    %v51 = vld [vmem:[%s3 + $0x20] sm:$0xff]
    %v52 = vld [vmem:[%s3 + $0x28] sm:$0xff]
    %54 = vset.pattern.permute.xlu0 0
    %55 = vperm.xlu0 %54, %v47
    %v56 = vpop.permute.xlu0 %55
    %59 = vset.pattern.permute.xlu0 0
    %60 = vperm.xlu0 %59, %v48
    %v61 = vpop.permute.xlu0 %60
    %64 = vset.pattern.permute.xlu0 0
    %65 = vperm.xlu0 %64, %v49
    %v66 = vpop.permute.xlu0 %65
    %69 = vset.pattern.permute.xlu0 0
    %70 = vperm.xlu0 %69, %v50
    %v71 = vpop.permute.xlu0 %70
    %74 = vset.pattern.permute.xlu0 0
    %75 = vperm.xlu0 %74, %v51
    %v76 = vpop.permute.xlu0 %75
    %79 = vset.pattern.permute.xlu0 0
    %80 = vperm.xlu0 %79, %v52
    %v81 = vpop.permute.xlu0 %80
    %v89 = vunpack.c.l.b16 %v25
    %v90 = vunpack.c.l.b16 %v26
    %v91 = vunpack.c.l.b16 %v27
    %v92 = vunpack.c.l.b16 %v28
    %v93 = vunpack.c.l.b16 %v29
    %v94 = vunpack.c.l.b16 %v30
    %v95 = vpack.c.b16 %v90, %v89
    %v96 = vpack.c.b16 %v92, %v91
    %v97 = vpack.c.b16 %v94, %v93
    %v114 = vunpack.c.l.b16 %v31
    %v115 = vunpack.c.l.b16 %v32
    %v116 = vunpack.c.l.b16 %v33
    %v117 = vunpack.c.l.b16 %v34
    %v118 = vunpack.c.l.b16 %v35
    %v119 = vunpack.c.l.b16 %v36
    %v120 = vunpack.c.l.b16 %v37
    %v121 = vunpack.c.l.b16 %v38
    %v122 = vunpack.c.l.b16 %v39
    %v123 = vunpack.c.l.b16 %v40
    %v124 = vunpack.c.l.b16 %v41
    %v125 = vunpack.c.l.b16 %v42
    %v126 = vunpack.c.l.b16 %v43
    %v127 = vunpack.c.l.b16 %v44
    %v128 = vunpack.c.l.b16 %v45
    %v129 = vunpack.c.l.b16 %v46
    %v130 = vpack.c.b16 %v115, %v114
    %v131 = vpack.c.b16 %v117, %v116
    %v132 = vpack.c.b16 %v119, %v118
    %v133 = vpack.c.b16 %v121, %v120
    %v134 = vpack.c.b16 %v123, %v122
    %v135 = vpack.c.b16 %v125, %v124
    %v136 = vpack.c.b16 %v127, %v126
    %v137 = vpack.c.b16 %v129, %v128
    %vm138 = vcmask 261120
    %v140 = vsel %vm138, %v95, 0
    %v143 = vsel %vm138, %v96, 0
    %v146 = vsel %vm138, %v97, 0
    %v149 = vsel %vm138, %v130, 0
    %v152 = vsel %vm138, %v131, 0
    %v155 = vsel %vm138, %v132, 0
    %v158 = vsel %vm138, %v133, 0
    %v161 = vsel %vm138, %v134, 0
    %v164 = vsel %vm138, %v135, 0
    %v167 = vsel %vm138, %v136, 0
    %v170 = vsel %vm138, %v137, 0
    %172 = vmatprep.subr.bf16.mxu0 0
    %173 = vmatpush1.bf16.xpose.msra.mxu0 %v170
    %174 = vmatprep.subr.bf16.mxu0 0
    %175 = vmatpush1.bf16.xpose.msra.mxu0 %v167
    %176 = vmatprep.subr.bf16.mxu0 0
    %177 = vmatpush1.bf16.xpose.msra.mxu0 %v164
    %178 = vmatprep.subr.bf16.mxu0 0
    %179 = vmatpush1.bf16.xpose.msra.mxu0 %v161
    %180 = vmatprep.subr.bf16.mxu0 0
    %181 = vmatpush1.bf16.xpose.msra.mxu0 %v158
    %182 = vmatprep.subr.bf16.mxu0 0
    %183 = vmatpush1.bf16.xpose.msra.mxu0 %v155
    %184 = vmatprep.subr.bf16.mxu0 0
    %185 = vmatpush1.bf16.xpose.msra.mxu0 %v152
    %186 = vmatprep.subr.bf16.mxu0 0
    %187 = vmatpush1.bf16.xpose.msra.mxu0 %v149
    %188 = vmatprep.subr.bf16.mxu0 0
    %189 = vmatpush2.bf16.xpose.msra.mxu0 0
    %190 = vmatprep.subr.bf16.mxu0 0
    %191 = vmatpush2.bf16.xpose.msra.mxu0 0
    %192 = vmatprep.subr.bf16.mxu0 0
    %193 = vmatpush2.bf16.xpose.msra.mxu0 0
    %194 = vmatprep.subr.bf16.mxu0 0
    %195 = vmatpush2.bf16.xpose.msra.mxu0 0
    %196 = vmatprep.subr.bf16.mxu0 0
    %197 = vmatpush2.bf16.xpose.msra.mxu0 0
    %198 = vmatprep.subr.bf16.mxu0 0
    %199 = vmatpush2.bf16.xpose.msra.mxu0 0
    %200 = vmatprep.subr.bf16.mxu0 0
    %201 = vmatpush2.bf16.xpose.msra.mxu0 0
    %202 = vmatprep.subr.bf16.mxu0 0
    %203 = vmatpush2.bf16.xpose.msra.mxu0 0
    %204 = vmatprep.mubr.bf16.mxu0 0
    %205 = vmatmul.mubr.bf16.gmra.mxu0 %v140
    %v206 = vpop.f32.mrf.mxu0
    %v207 = vadd.f32 %v56, %v206
    %v208 = vpop.f32.mrf.mxu0
    %v209 = vpop.f32.mrf.mxu0
    %v210 = vadd.f32 %v61, %v209
    %v211 = vpop.f32.mrf.mxu0
    %212 = vmatprep.mubr.bf16.mxu0 0
    %213 = vmatmul.mubr.bf16.gmra.mxu0 %v143
    %v214 = vpop.f32.mrf.mxu0
    %v215 = vadd.f32 %v66, %v214
    %v216 = vpop.f32.mrf.mxu0
    %v217 = vpop.f32.mrf.mxu0
    %v218 = vadd.f32 %v71, %v217
    %v219 = vpop.f32.mrf.mxu0
    %220 = vmatprep.mubr.bf16.mxu0 0
    %221 = vmatmul.mubr.bf16.gmra.mxu0 %v146
    %v222 = vpop.f32.mrf.mxu0
    %v223 = vadd.f32 %v76, %v222
    %v224 = vpop.f32.mrf.mxu0
    %v225 = vpop.f32.mrf.mxu0
    %v226 = vadd.f32 %v81, %v225
    %v227 = vpop.f32.mrf.mxu0
    %228 = vdwg.mxu0
    %v229 = vld [vmem:[%s0] sm:$0x1]
    %v230 = vld [vmem:[%s4] sm:$0xff]
    %v231 = vld [vmem:[%s4 + $0x8] sm:$0xff]
    %v232 = vld [vmem:[%s4 + $0x10] sm:$0xff]
    %v233 = vld [vmem:[%s4 + $0x18] sm:$0xff]
    %v234 = vld [vmem:[%s4 + $0x20] sm:$0xff]
    %v235 = vld [vmem:[%s4 + $0x28] sm:$0xff]
    %vm236 = vcmp.eq.s32.totalorder %v229, 0
    %v237 = vsel %vm236, 1, 0
    %v238 = vlaneseq
    %v239 = vshrl.u32 %v238, 7
    %v240 = vsub.s32 0, %v239
    %v241 = vrot.slane %v237, %v240
    %vm242 = vcmp.eq.s32.totalorder %v241, 1
    %v243 = vsel %vm242, %v207, 0.0
    %v244 = vsel %vm242, %v210, 0.0
    %246 = vset.pattern.permute.xlu0 0
    %247 = vperm.xlu0 %246, %v230
    %v248 = vpop.permute.xlu0 %247
    %251 = vset.pattern.permute.xlu0 0
    %252 = vperm.xlu0 %251, %v231
    %v253 = vpop.permute.xlu0 %252
    %v255 = vsel %vm242, %v248, 0.0
    %v256 = vsel %vm242, %v253, 0.0
    %vm257 = vcmp.eq.s32.totalorder %v229, 1
    %v258 = vsel %vm257, 1, 0
    %v259 = vlaneseq
    %v260 = vshrl.u32 %v259, 7
    %v261 = vsub.s32 0, %v260
    %v262 = vrot.slane %v258, %v261
    %vm263 = vcmp.eq.s32.totalorder %v262, 1
    %v264 = vsel %vm263, %v215, %v243
    %v265 = vsel %vm263, %v218, %v244
    %267 = vset.pattern.permute.xlu0 0
    %268 = vperm.xlu0 %267, %v232
    %v269 = vpop.permute.xlu0 %268
    %272 = vset.pattern.permute.xlu0 0
    %273 = vperm.xlu0 %272, %v233
    %v274 = vpop.permute.xlu0 %273
    %v276 = vsel %vm263, %v269, %v255
    %v277 = vsel %vm263, %v274, %v256
    %vm278 = vcmp.eq.s32.totalorder %v229, 2
    %v279 = vsel %vm278, 1, 0
    %v280 = vlaneseq
    %v281 = vshrl.u32 %v280, 7
    %v282 = vsub.s32 0, %v281
    %v283 = vrot.slane %v279, %v282
    %vm284 = vcmp.eq.s32.totalorder %v283, 1
    %v285 = vsel %vm284, %v223, %v264
    %v286 = vsel %vm284, %v226, %v265
    %288 = vset.pattern.permute.xlu0 0
    %289 = vperm.xlu0 %288, %v234
    %v290 = vpop.permute.xlu0 %289
    %293 = vset.pattern.permute.xlu0 0
    %294 = vperm.xlu0 %293, %v235
    %v295 = vpop.permute.xlu0 %294
    %v297 = vsel %vm284, %v290, %v276
    %v298 = vsel %vm284, %v295, %v277
    %v299 = vxor.u32 %v285, 2147483648
    %v300 = vxor.u32 %v286, 2147483648
    %v301 = vmul.f32 %v299, 1.442695
    %v302 = vpow.pop %v301
    %v303 = vmul.f32 %v300, 1.442695
    %v304 = vpow.pop %v303
    %v305 = vadd.f32 %v302, 1.0
    %v306 = vadd.f32 %v304, 1.0
    %v307 = vrcp.pop %v305
    %v308 = vmul.f32 1.0, %v307
    %v309 = vrcp.pop %v306
    %v310 = vmul.f32 1.0, %v309
    %v311 = vmul.f32 %v308, %v297
    %v312 = vmul.f32 %v310, %v298
    %313 = vst [vmem:[#allocation2] sm:$0xff] %v311
    %314 = vst [vmem:[#allocation2 + $0x8] sm:$0xff] %v312
    %315 = vst [vmem:[#allocation4] sm:$0xff] %v297
    %316 = vst [vmem:[#allocation4 + $0x8] sm:$0xff] %v298
    // Predicated region
    $region22: #{tpu_custom_call.1} parent=1 // pred_check
      _
    $region23: #{tpu_custom_call.1} parent=1 // pred_check_branch
      %318 = sbr.rel (0) target = $region25
    $region24: #{tpu_custom_call.1} parent=1 // pred_region
      %s320 = ssub.s32 256, 256
      %321 = vsyncadd [#allocation3], %s320
      %s322 = sshll.u32 [#allocation2], 4
      %s323 = int_to_ptr.vmem [resolvable:$true] %s322
      %328 = dma.vmem_to_hbm [thread:$0]  %s323, 256, %s5, [#allocation3], 128, 128, 8
    $region25: #{tpu_custom_call.1} parent=1 // pred_fallthru
      _
    // Predicated region
    $region26: #{tpu_custom_call.1} parent=1 // pred_check
      _
    $region27: #{tpu_custom_call.1} parent=1 // pred_check_branch
      %330 = sbr.rel (0) target = $region29
    $region28: #{tpu_custom_call.1} parent=1 // pred_region
      %s332 = ssub.s32 256, 256
      %333 = vsyncadd [#allocation5], %s332
      %s334 = sshll.u32 [#allocation4], 4
      %s335 = int_to_ptr.vmem [resolvable:$true] %s334
      %340 = dma.vmem_to_hbm [thread:$0]  %s335, 256, %s6, [#allocation5], 128, 128, 8
    $region29: #{tpu_custom_call.1} parent=1 // pred_fallthru
      _
    // Predicated region
    $region30: #{tpu_custom_call.1} parent=1 // pred_check
      _
    $region31: #{tpu_custom_call.1} parent=1 // pred_check_branch
      %342 = sbr.rel (0) target = $region33
    $region32: #{tpu_custom_call.1} parent=1 // pred_region
      %343 = dma.done [#allocation3], 256
    $region33: #{tpu_custom_call.1} parent=1 // pred_fallthru
      _
    // Predicated region
    $region34: #{tpu_custom_call.1} parent=1 // pred_check
      _
    $region35: #{tpu_custom_call.1} parent=1 // pred_check_branch
      %345 = sbr.rel (0) target = $region37
    $region36: #{tpu_custom_call.1} parent=1 // pred_region
      %346 = dma.done [#allocation5], 256
    $region37: #{tpu_custom_call.1} parent=1 // pred_fallthru
      _
    %347 = vsyncpa [#allocation3], 1
    %348 = vsyncpa [#allocation5], 1

</llo_original>
